<compile_context>
chip_gen: v6e
topology: v6e:2x2x1
jax: 0.10.0
libtpu: 0.0.40
codegen_flags: <defaults>
</compile_context>

<pallas_src>
import jax
import jax.numpy as jnp
from jax.experimental import pallas as pl
from jax.experimental.pallas import tpu as pltpu


def _round_up(x, m):
    return ((x + m - 1) // m) * m


def _vmem_capacity_bytes():
    """Per-core VMEM capacity; conservative fallback if the query fails."""
    try:
        return int(pltpu.get_tpu_info().vmem_capacity_bytes)
    except Exception:
        return 64 << 20  # v7x per-TC size: safe lower bound for all gens


# ---------------------------------------------------------------------------
# Path 1: VMEM-resident table (small/medium tables).
# ---------------------------------------------------------------------------
def _vmem_gather_kernel(idx_ref, table_ref, out_ref):
    # idx_ref   : (b_pad,) int32 in SMEM (scalar prefetch)
    # table_ref : (N, D) table, VMEM-resident across the whole grid
    # out_ref   : (g, D) output block for this grid step
    i = pl.program_id(0)
    g = out_ref.shape[0]
    for j in range(g):                       # static unroll over g rows
        row = idx_ref[i * g + j]
        out_ref[j, :] = table_ref[row, :]    # on-chip gather: vld -> vst


# ---------------------------------------------------------------------------
# Path 2: manual-DMA gather from HBM (large tables).
# ---------------------------------------------------------------------------
def _hbm_gather_kernel(idx_ref, table_hbm, out_ref, sem):
    # idx_ref   : (b_pad,) int32 in SMEM (scalar prefetch)
    # table_hbm : (N, D) raw HBM ref (memory_space=pl.ANY)
    # out_ref   : (g, D) VMEM output block — DMA destination (no staging copy)
    # sem       : (g,) DMA semaphores
    i = pl.program_id(0)
    g = out_ref.shape[0]
    copies = []
    # Issue all g row DMAs back-to-back so they are all in flight at once.
    for j in range(g):
        row = idx_ref[i * g + j]
        cp = pltpu.make_async_copy(
            table_hbm.at[pl.ds(row, 1), :],   # (1, D) row in HBM
            out_ref.at[pl.ds(j, 1), :],       # lands directly in the output block
            sem.at[j],
        )
        cp.start()
        copies.append(cp)
    # Single wait pass after every copy has been started.
    for cp in copies:
        cp.wait()


def entity_forward(idx, table, *, max_rows_per_step=128, force_hbm_gather=False):
    """Pallas equivalent of Entity.forward: table[idx] (gather rows of table)."""
    orig_shape = idx.shape
    n, d = table.shape
    itemsize = jnp.dtype(table.dtype).itemsize

    flat = idx.reshape(-1).astype(jnp.int32)
    # Clamp like jnp.take's default 'clip' mode (torch nn.Embedding would raise
    # on OOB); also guarantees every DMA / load row index is in-range.
    flat = jnp.clip(flat, 0, n - 1)
    b = int(flat.shape[0])

    # Dtype-aware sublane alignment for the (g, D) output block:
    # 8 for f32, 16 for bf16, 32 for int8.
    sub = max(8, 32 // itemsize)

    b_aligned = _round_up(b, sub)
    # Rows per grid step: aligned, large enough to amortize per-step overhead,
    # but not bigger than the (aligned) batch.
    g = min(_round_up(max_rows_per_step, sub), b_aligned)
    # Keep >= 2 grid steps when the batch allows it, so the "parallel" axis can
    # actually shard across v7x's two TensorCores.
    if b_aligned // g < 2 and b_aligned >= 2 * sub:
        g = _round_up((b_aligned + 1) // 2, sub)
    b_pad = _round_up(b, g)
    flat = jnp.pad(flat, (0, b_pad - b))     # padded lookups hit row 0, discarded later
    grid = (b_pad // g,)

    table_bytes = n * d * itemsize
    out_bytes = b_pad * d * itemsize

    vmem_cap = _vmem_capacity_bytes()
    # Generation-aware resident-table threshold:
    #   v7x (64 MiB VMEM)   -> ~25 MiB
    #   v5e/v6e (128 MiB)   -> ~51 MiB
    resident_threshold = min(int(vmem_cap * 0.4), 96 << 20)
    use_resident = (not force_hbm_gather) and (table_bytes <= resident_threshold)

    if use_resident:
        bytes_accessed = table_bytes + out_bytes + b_pad * 4
    else:
        bytes_accessed = 2 * out_bytes + b_pad * 4
    cost = pl.CostEstimate(flops=0, transcendentals=0,
                           bytes_accessed=int(bytes_accessed))

    out_spec = pl.BlockSpec((g, d), lambda i, idx_ref: (i, 0))
    out_shape = jax.ShapeDtypeStruct((b_pad, d), table.dtype)

    if use_resident:
        # Table loaded once (constant index_map -> resident across the grid);
        # raise the scoped VMEM limit so mid/large resident tables compile on
        # v5e (16 MiB default) / v6e (32 MiB default), capped below physical.
        needed = table_bytes + 4 * g * d * itemsize + (4 << 20)
        vmem_limit = int(min(max(needed, 16 << 20), vmem_cap - (8 << 20)))
        out = pl.pallas_call(
            _vmem_gather_kernel,
            out_shape=out_shape,
            grid_spec=pltpu.PrefetchScalarGridSpec(
                num_scalar_prefetch=1,                 # flat indices -> SMEM
                grid=grid,
                in_specs=[pl.BlockSpec((n, d), lambda i, idx_ref: (0, 0))],
                out_specs=out_spec,
            ),
            compiler_params=pltpu.CompilerParams(
                dimension_semantics=("parallel",),     # disjoint output blocks
                vmem_limit_bytes=vmem_limit,
            ),
            cost_estimate=cost,
        )(flat, table)
    else:
        # Table stays in HBM; rows are DMA'd straight into the output block.
        out = pl.pallas_call(
            _hbm_gather_kernel,
            out_shape=out_shape,
            grid_spec=pltpu.PrefetchScalarGridSpec(
                num_scalar_prefetch=1,                 # flat indices -> SMEM
                grid=grid,
                in_specs=[pl.BlockSpec(memory_space=pl.ANY)],
                out_specs=out_spec,
                scratch_shapes=[pltpu.SemaphoreType.DMA((g,))],
            ),
            compiler_params=pltpu.CompilerParams(
                dimension_semantics=("parallel",),
            ),
            cost_estimate=cost,
        )(flat, table)

    return out[:b].reshape(*orig_shape, d)


def entity_update(table, new_idx):
    """Pure-JAX glue mirroring Entity.update: grow table to new_idx+1 rows,
    new rows initialized to the mean of existing embeddings."""
    n, d = table.shape
    if new_idx < n:
        return table
    mean_row = jnp.mean(table, axis=0, keepdims=True)
    extra = jnp.tile(mean_row, (new_idx - n + 1, 1))
    return jnp.concatenate([table, extra], axis=0)


if __name__ == "__main__":
    key = jax.random.PRNGKey(0)
    k_table, k_idx = jax.random.split(key)

    n_entities = 64
    embedding_dim = 128

    # nn.Embedding default init: N(0, 1)
    table = jax.random.normal(k_table, (n_entities, embedding_dim), dtype=jnp.float32)

    # idx "shape is arbitrary" -> use a small 2-D batch of indices
    idx = jax.random.randint(k_idx, (2, 8), 0, n_entities, dtype=jnp.int32)

    ref = jnp.take(table, idx, axis=0)  # pure-JAX reference for table[idx]

    # Path 1: VMEM-resident table (default for this small table)
    out_fast = entity_forward(idx, table)
    out_fast = jax.block_until_ready(out_fast)
    assert out_fast.shape == (2, 8, embedding_dim)
    assert jnp.allclose(out_fast, ref, atol=1e-6), "resident path mismatch vs reference"

    # Path 2: manual-DMA HBM gather (forced, to exercise the big-table path)
    out_hbm = entity_forward(idx, table, force_hbm_gather=True)
    out_hbm = jax.block_until_ready(out_hbm)
    assert out_hbm.shape == (2, 8, embedding_dim)
    assert jnp.allclose(out_hbm, ref, atol=1e-6), "HBM-gather path mismatch vs reference"

    # exercise the update() path once (glue, not a kernel)
    table2 = entity_update(table, n_entities + 3)
    assert table2.shape == (n_entities + 4, embedding_dim)

    print("KERNEL_OK")
</pallas_src>

<mosaic_0001>
module attributes {stable_mosaic.version = 11 : i64} {
  func.func @_vmem_gather_kernel(%arg0: i32, %arg1: memref<16xi32, #tpu.memory_space<smem>>, %arg2: memref<64x128xf32, #tpu.memory_space<vmem>>, %arg3: memref<8x128xf32, #tpu.memory_space<vmem>>) attributes {dimension_semantics = [#tpu.dimension_semantics<parallel>], iteration_bounds = array<i64: 2>, scalar_prefetch = 1 : i64, scratch_operands = 0 : i64, tpu.core_type = #tpu.core_type<tc>, window_params = [{pipeline_mode = #tpu.pipeline_mode<synchronous>, transform_indices = @transform_0, window_bounds = array<i64: 64, 128>}, {transform_indices = @transform_1, window_bounds = array<i64: 8, 128>}]} {
    %c8_i32 = arith.constant 8 : i32
    %0 = arith.muli %arg0, %c8_i32 : i32
    %c0_i32 = arith.constant 0 : i32
    %1 = arith.addi %0, %c0_i32 : i32
    %2 = arith.index_cast %1 : i32 to index
    %3 = memref.load %arg1[%2] : memref<16xi32, #tpu.memory_space<smem>>
    %4 = arith.index_cast %3 : i32 to index
    %c0 = arith.constant 0 : index
    %5 = vector.load %arg2[%4, %c0] : memref<64x128xf32, #tpu.memory_space<vmem>>, vector<1x128xf32>
    %6 = vector.shape_cast %5 : vector<1x128xf32> to vector<128xf32>
    %c0_0 = arith.constant 0 : index
    %c0_1 = arith.constant 0 : index
    %7 = vector.load %arg3[%c0_0, %c0_1] : memref<8x128xf32, #tpu.memory_space<vmem>>, vector<1x128xf32>
    %8 = vector.shape_cast %7 : vector<1x128xf32> to vector<128xf32>
    %9 = vector.shape_cast %6 : vector<128xf32> to vector<1x128xf32>
    tpu.vector_store %arg3[%c0_0, %c0_1], %9 {strides = array<i32>} : memref<8x128xf32, #tpu.memory_space<vmem>>, vector<1x128xf32>,
    %c8_i32_2 = arith.constant 8 : i32
    %10 = arith.muli %arg0, %c8_i32_2 : i32
    %c1_i32 = arith.constant 1 : i32
    %11 = arith.addi %10, %c1_i32 : i32
    %12 = arith.index_cast %11 : i32 to index
    %13 = memref.load %arg1[%12] : memref<16xi32, #tpu.memory_space<smem>>
    %14 = arith.index_cast %13 : i32 to index
    %c0_3 = arith.constant 0 : index
    %15 = vector.load %arg2[%14, %c0_3] : memref<64x128xf32, #tpu.memory_space<vmem>>, vector<1x128xf32>
    %16 = vector.shape_cast %15 : vector<1x128xf32> to vector<128xf32>
    %c1 = arith.constant 1 : index
    %c0_4 = arith.constant 0 : index
    %17 = vector.load %arg3[%c1, %c0_4] : memref<8x128xf32, #tpu.memory_space<vmem>>, vector<1x128xf32>
    %18 = vector.shape_cast %17 : vector<1x128xf32> to vector<128xf32>
    %19 = vector.shape_cast %16 : vector<128xf32> to vector<1x128xf32>
    tpu.vector_store %arg3[%c1, %c0_4], %19 {strides = array<i32>} : memref<8x128xf32, #tpu.memory_space<vmem>>, vector<1x128xf32>,
    %c8_i32_5 = arith.constant 8 : i32
    %20 = arith.muli %arg0, %c8_i32_5 : i32
    %c2_i32 = arith.constant 2 : i32
    %21 = arith.addi %20, %c2_i32 : i32
    %22 = arith.index_cast %21 : i32 to index
    %23 = memref.load %arg1[%22] : memref<16xi32, #tpu.memory_space<smem>>
    %24 = arith.index_cast %23 : i32 to index
    %c0_6 = arith.constant 0 : index
    %25 = vector.load %arg2[%24, %c0_6] : memref<64x128xf32, #tpu.memory_space<vmem>>, vector<1x128xf32>
    %26 = vector.shape_cast %25 : vector<1x128xf32> to vector<128xf32>
    %c2 = arith.constant 2 : index
    %c0_7 = arith.constant 0 : index
    %27 = vector.load %arg3[%c2, %c0_7] : memref<8x128xf32, #tpu.memory_space<vmem>>, vector<1x128xf32>
    %28 = vector.shape_cast %27 : vector<1x128xf32> to vector<128xf32>
    %29 = vector.shape_cast %26 : vector<128xf32> to vector<1x128xf32>
    tpu.vector_store %arg3[%c2, %c0_7], %29 {strides = array<i32>} : memref<8x128xf32, #tpu.memory_space<vmem>>, vector<1x128xf32>,
    %c8_i32_8 = arith.constant 8 : i32
    %30 = arith.muli %arg0, %c8_i32_8 : i32
    %c3_i32 = arith.constant 3 : i32
    %31 = arith.addi %30, %c3_i32 : i32
    %32 = arith.index_cast %31 : i32 to index
    %33 = memref.load %arg1[%32] : memref<16xi32, #tpu.memory_space<smem>>
    %34 = arith.index_cast %33 : i32 to index
    %c0_9 = arith.constant 0 : index
    %35 = vector.load %arg2[%34, %c0_9] : memref<64x128xf32, #tpu.memory_space<vmem>>, vector<1x128xf32>
    %36 = vector.shape_cast %35 : vector<1x128xf32> to vector<128xf32>
    %c3 = arith.constant 3 : index
    %c0_10 = arith.constant 0 : index
    %37 = vector.load %arg3[%c3, %c0_10] : memref<8x128xf32, #tpu.memory_space<vmem>>, vector<1x128xf32>
    %38 = vector.shape_cast %37 : vector<1x128xf32> to vector<128xf32>
    %39 = vector.shape_cast %36 : vector<128xf32> to vector<1x128xf32>
    tpu.vector_store %arg3[%c3, %c0_10], %39 {strides = array<i32>} : memref<8x128xf32, #tpu.memory_space<vmem>>, vector<1x128xf32>,
    %c8_i32_11 = arith.constant 8 : i32
    %40 = arith.muli %arg0, %c8_i32_11 : i32
    %c4_i32 = arith.constant 4 : i32
    %41 = arith.addi %40, %c4_i32 : i32
    %42 = arith.index_cast %41 : i32 to index
    %43 = memref.load %arg1[%42] : memref<16xi32, #tpu.memory_space<smem>>
    %44 = arith.index_cast %43 : i32 to index
    %c0_12 = arith.constant 0 : index
    %45 = vector.load %arg2[%44, %c0_12] : memref<64x128xf32, #tpu.memory_space<vmem>>, vector<1x128xf32>
    %46 = vector.shape_cast %45 : vector<1x128xf32> to vector<128xf32>
    %c4 = arith.constant 4 : index
    %c0_13 = arith.constant 0 : index
    %47 = vector.load %arg3[%c4, %c0_13] : memref<8x128xf32, #tpu.memory_space<vmem>>, vector<1x128xf32>
    %48 = vector.shape_cast %47 : vector<1x128xf32> to vector<128xf32>
    %49 = vector.shape_cast %46 : vector<128xf32> to vector<1x128xf32>
    tpu.vector_store %arg3[%c4, %c0_13], %49 {strides = array<i32>} : memref<8x128xf32, #tpu.memory_space<vmem>>, vector<1x128xf32>,
    %c8_i32_14 = arith.constant 8 : i32
    %50 = arith.muli %arg0, %c8_i32_14 : i32
    %c5_i32 = arith.constant 5 : i32
    %51 = arith.addi %50, %c5_i32 : i32
    %52 = arith.index_cast %51 : i32 to index
    %53 = memref.load %arg1[%52] : memref<16xi32, #tpu.memory_space<smem>>
    %54 = arith.index_cast %53 : i32 to index
    %c0_15 = arith.constant 0 : index
    %55 = vector.load %arg2[%54, %c0_15] : memref<64x128xf32, #tpu.memory_space<vmem>>, vector<1x128xf32>
    %56 = vector.shape_cast %55 : vector<1x128xf32> to vector<128xf32>
    %c5 = arith.constant 5 : index
    %c0_16 = arith.constant 0 : index
    %57 = vector.load %arg3[%c5, %c0_16] : memref<8x128xf32, #tpu.memory_space<vmem>>, vector<1x128xf32>
    %58 = vector.shape_cast %57 : vector<1x128xf32> to vector<128xf32>
    %59 = vector.shape_cast %56 : vector<128xf32> to vector<1x128xf32>
    tpu.vector_store %arg3[%c5, %c0_16], %59 {strides = array<i32>} : memref<8x128xf32, #tpu.memory_space<vmem>>, vector<1x128xf32>,
    %c8_i32_17 = arith.constant 8 : i32
    %60 = arith.muli %arg0, %c8_i32_17 : i32
    %c6_i32 = arith.constant 6 : i32
    %61 = arith.addi %60, %c6_i32 : i32
    %62 = arith.index_cast %61 : i32 to index
    %63 = memref.load %arg1[%62] : memref<16xi32, #tpu.memory_space<smem>>
    %64 = arith.index_cast %63 : i32 to index
    %c0_18 = arith.constant 0 : index
    %65 = vector.load %arg2[%64, %c0_18] : memref<64x128xf32, #tpu.memory_space<vmem>>, vector<1x128xf32>
    %66 = vector.shape_cast %65 : vector<1x128xf32> to vector<128xf32>
    %c6 = arith.constant 6 : index
    %c0_19 = arith.constant 0 : index
    %67 = vector.load %arg3[%c6, %c0_19] : memref<8x128xf32, #tpu.memory_space<vmem>>, vector<1x128xf32>
    %68 = vector.shape_cast %67 : vector<1x128xf32> to vector<128xf32>
    %69 = vector.shape_cast %66 : vector<128xf32> to vector<1x128xf32>
    tpu.vector_store %arg3[%c6, %c0_19], %69 {strides = array<i32>} : memref<8x128xf32, #tpu.memory_space<vmem>>, vector<1x128xf32>,
    %c8_i32_20 = arith.constant 8 : i32
    %70 = arith.muli %arg0, %c8_i32_20 : i32
    %c7_i32 = arith.constant 7 : i32
    %71 = arith.addi %70, %c7_i32 : i32
    %72 = arith.index_cast %71 : i32 to index
    %73 = memref.load %arg1[%72] : memref<16xi32, #tpu.memory_space<smem>>
    %74 = arith.index_cast %73 : i32 to index
    %c0_21 = arith.constant 0 : index
    %75 = vector.load %arg2[%74, %c0_21] : memref<64x128xf32, #tpu.memory_space<vmem>>, vector<1x128xf32>
    %76 = vector.shape_cast %75 : vector<1x128xf32> to vector<128xf32>
    %c7 = arith.constant 7 : index
    %c0_22 = arith.constant 0 : index
    %77 = vector.load %arg3[%c7, %c0_22] : memref<8x128xf32, #tpu.memory_space<vmem>>, vector<1x128xf32>
    %78 = vector.shape_cast %77 : vector<1x128xf32> to vector<128xf32>
    %79 = vector.shape_cast %76 : vector<128xf32> to vector<1x128xf32>
    tpu.vector_store %arg3[%c7, %c0_22], %79 {strides = array<i32>} : memref<8x128xf32, #tpu.memory_space<vmem>>, vector<1x128xf32>,
    return
  }
  func.func @transform_0(%arg0: i32, %arg1: memref<16xi32, #tpu.memory_space<smem>>) -> (i32, i32) {
    %c0_i32 = arith.constant 0 : i32
    %c0_i32_0 = arith.constant 0 : i32
    %c0_i32_1 = arith.constant 0 : i32
    return %c0_i32, %c0_i32_0 : i32, i32
  }
  func.func @transform_1(%arg0: i32, %arg1: memref<16xi32, #tpu.memory_space<smem>>) -> (i32, i32) {
    %c0_i32 = arith.constant 0 : i32
    %c0_i32_0 = arith.constant 0 : i32
    return %arg0, %c0_i32 : i32, i32
  }
}

</mosaic_0001>

<llo_original>
// kernel: tpu_custom_call.1
$region0: #{tpu_custom_call.1}
  #allocation0 [shape = 'u32[]', space=smem, size = 0x4, offset = 0x4, fixed_abs, tag = 'smem constant byte address 0x4 - core index']
  #allocation1 [shape = 'u32[144,128]{1,0:T(1,128)}', space=vmem, size = 0x12000, scoped, tag = 'internal scratch']
  #allocation2 [shape = 's32[1]{0}', space=sflag, size = 0x4, scoped, tag = 'scoped memory for tpu_custom_call.1']
  #allocation3 [shape = 'u8[512]{0}', space=smem, size = 0x200, scoped, tag = 'prefetched SMEM operand 0']
  %s0 = inlined_call_operand.hbm [shape: s32[16], index: 0, kind: input, shape index: {}]
  %s1 = inlined_call_operand.hbm [shape: f32[64,128], index: 1, kind: input, shape index: {}]
  %s2 = inlined_call_operand.hbm [shape: f32[16,128], index: 2, kind: output, shape index: {}]
  %s3 = sld [smem:[#allocation0]]
  $region41: #{tpu_custom_call.1} parent=0
    _
  %s5 = ssub.s32 1, %s3
  %s6 = scalar_select 0, %s5, %s3
  %8 = dma.hbm_to_smem %s0, 16, [#allocation3], [#allocation2]
  %9 = dma.done [#allocation2], 16
  %10 = sfence
  $region1: #{tpu_custom_call.1} parent=0
    #allocation4 [shape = 'u8[32768]{0}', space=vmem, size = 0x8000, scoped, tag = 'input window, operand 1, single buffered']
    #allocation5 [shape = 's32[2]{0}', space=sflag, size = 0x8, scoped, tag = 'scoped memory for tpu_custom_call.1']
    #allocation6 [shape = 's32[2]{0}', space=sflag, size = 0x8, scoped, tag = 'scoped memory for tpu_custom_call.1']
    #allocation7 [shape = 'u8[8192]{0}', space=vmem, size = 0x2000, scoped, tag = 'output window, operand 0']
    %11 = vsyncpa [#allocation5], 0
    %12 = vsyncpa [#allocation6], 0
    %s13 = scalar_lea.sflag [#allocation6], 1
    %14 = vsyncpa %s13, 0
    loop: start=0, step=1, limit=4
    $region2: #{tpu_custom_call.1} parent=1 // loop_pre_header
      _
    $region3: #{tpu_custom_call.1} parent=1 // loop_header
      %s16 = sphi 0, %s20
      %p17 = scmp.ge.s32.totalorder %s16, 4
      %s24 = sphi 0, %s24
      %s26 = sphi 0, %s24
      %s27 = sphi 0, %s26
      %s41 = sphi 0, %s27
      %s47 = sphi 0, %s49
      %s50 = sphi 0, %s47
      %s51 = sphi 0, %s50
      %s67 = sphi 0, %s51
    $region4: #{tpu_custom_call.1} parent=1 // loop_header_branch
      %19 = sbr.rel (%p17) target = $region8
    $region5: #{tpu_custom_call.1} parent=1 // loop_body
      %s21 = ssub.s32 %s16, 1
      %s22 = ssub.s32 %s16, 2
      %s23 = sadd.s32 %s16, 1
      %s25 = sadd.s32 %s24, 1
      %p28 = scmp.eq.s32.totalorder %s16, 1
      %p29 = scmp.ne.s32.totalorder %s24, %s26
      %p30 = scmp.eq.s32.totalorder %s16, 0
      %p31 = por %p29, %p30
      %p32 = scmp.ne.s32.totalorder %s24, %s26
      %p33 = scmp.eq.s32.totalorder %s21, 1
      %p34 = por %p32, %p33
      %p35 = scmp.ne.s32.totalorder %s26, %s27
      %p36 = scmp.eq.s32.totalorder %s21, 0
      %p37 = por %p35, %p36
      %p38 = scmp.ne.s32.totalorder %s26, %s27
      %p39 = scmp.eq.s32.totalorder %s22, 1
      %p40 = por %p38, %p39
      %p42 = scmp.ne.s32.totalorder %s27, %s41
      %p43 = scmp.eq.s32.totalorder %s22, 0
      %p44 = por %p42, %p43
      %s45 = ssub.s32 %s16, %s23
      %p46 = scmp.eq.s32.totalorder %s45, 0
      %s48 = sadd.s32 %s47, 1
      %s49 = scalar_select %p46, %s47, %s48
      %p52 = pneg %p46
      %p53 = scmp.eq.s32.totalorder %s16, 1
      %p54 = por %p52, %p53
      %p55 = scmp.ne.s32.totalorder %s47, %s50
      %p56 = scmp.eq.s32.totalorder %s16, 0
      %p57 = por %p55, %p56
      %p58 = scmp.ne.s32.totalorder %s47, %s50
      %p59 = scmp.eq.s32.totalorder %s21, 1
      %p60 = por %p58, %p59
      %p61 = scmp.ne.s32.totalorder %s50, %s51
      %p62 = scmp.eq.s32.totalorder %s21, 0
      %p63 = por %p61, %p62
      %p64 = scmp.ne.s32.totalorder %s50, %s51
      %p65 = scmp.eq.s32.totalorder %s22, 1
      %p66 = por %p64, %p65
      %p68 = scmp.ne.s32.totalorder %s51, %s67
      %p69 = scmp.eq.s32.totalorder %s22, 0
      %p70 = por %p68, %p69
      %p71 = scmp.le.s32.totalorder 1, %s16
      %p72 = scmp.lt.s32.totalorder %s16, 3
      %p73 = pnand %p71, %p72
      %p74 = pneg %p73
      // Predicated region
      $region9: #{tpu_custom_call.1} parent=5 // pred_check
        _
      $region10: #{tpu_custom_call.1} parent=5 // pred_check_branch
        %76 = sbr.rel (%p73) target = $region12
      $region11: #{tpu_custom_call.1} parent=5 // pred_region
        %s77 = ssub.s32 %s16, 1
        // Predicated region
        $region13: #{tpu_custom_call.1} parent=11 // pred_check
          %p78 = pneg %p37
        $region14: #{tpu_custom_call.1} parent=11 // pred_check_branch
          %80 = sbr.rel (%p78) target = $region16
        $region15: #{tpu_custom_call.1} parent=11 // pred_region
          %s82 = ssub.s32 1024, 1024
          %83 = vsyncadd [#allocation5], %s82
          %s84 = sshll.u32 [#allocation4], 4
          %s85 = int_to_ptr.vmem [resolvable:$true] %s84
          %90 = dma.hbm_to_vmem [thread:$0]  %s1, 1024, %s85, [#allocation5], 128, 128, 8
        $region16: #{tpu_custom_call.1} parent=11 // pred_fallthru
          _
      $region12: #{tpu_custom_call.1} parent=5 // pred_fallthru
        _
      %p91 = scmp.lt.s32.totalorder %s16, 2
      // Predicated region
      $region17: #{tpu_custom_call.1} parent=5 // pred_check
        %p92 = pneg %p91
      $region18: #{tpu_custom_call.1} parent=5 // pred_check_branch
        %94 = sbr.rel (%p92) target = $region20
      $region19: #{tpu_custom_call.1} parent=5 // pred_region
        _
      $region20: #{tpu_custom_call.1} parent=5 // pred_fallthru
        _
      %p95 = scmp.le.s32.totalorder 1, %s16
      %p96 = scmp.lt.s32.totalorder %s16, 3
      %p97 = pnand %p95, %p96
      %p98 = pneg %p97
      // Predicated region
      $region21: #{tpu_custom_call.1} parent=5 // pred_check
        _
      $region22: #{tpu_custom_call.1} parent=5 // pred_check_branch
        %100 = sbr.rel (%p97) target = $region24
      $region23: #{tpu_custom_call.1} parent=5 // pred_region
        %s101 = ssub.s32 %s16, 1
        // Predicated region
        $region25: #{tpu_custom_call.1} parent=23 // pred_check
          %p102 = pneg %p37
        $region26: #{tpu_custom_call.1} parent=23 // pred_check_branch
          %104 = sbr.rel (%p102) target = $region28
        $region27: #{tpu_custom_call.1} parent=23 // pred_region
          %105 = dma.done [#allocation5], 1024
        $region28: #{tpu_custom_call.1} parent=23 // pred_fallthru
          _
        %p106 = pneg %p37
        %p107 = pneg %p34
        %p108 = pneg %p63
        %p109 = pneg %p60
        %s110 = sand.u32 %s50, 1
        %s111 = scalar_lea.sflag [#allocation6], %s110
        %s112 = sand.u32 %s50, 1
        %s113 = smul.addr %s112, 8
        %s114 = scalar_lea.vmem [#allocation7], %s113
        %s115 = smul.u32 %s21, 8
        %s116 = sld [smem:[#allocation3 + %s115]]
        %s117 = scalar_lea.vmem [#allocation4], %s116
        %v118 = vld [vmem:[%s117] sm:$0x1]
        %119 = vst [vmem:[%s114] sm:$0x1] %v118
        %s120 = sadd.s32 %s115, 1
        %s121 = sld [smem:[#allocation3 + %s120]]
        %s122 = scalar_lea.vmem [#allocation4], %s121
        %v123 = vld [vmem:[%s122] sm:$0x1]
        %124 = vst [vmem:[%s114 + $0x1] sm:$0x1] %v123
        %s125 = sadd.s32 %s115, 2
        %s126 = sld [smem:[#allocation3 + %s125]]
        %s127 = scalar_lea.vmem [#allocation4], %s126
        %v128 = vld [vmem:[%s127] sm:$0x1]
        %129 = vst [vmem:[%s114 + $0x2] sm:$0x1] %v128
        %s130 = sadd.s32 %s115, 3
        %s131 = sld [smem:[#allocation3 + %s130]]
        %s132 = scalar_lea.vmem [#allocation4], %s131
        %v133 = vld [vmem:[%s132] sm:$0x1]
        %134 = vst [vmem:[%s114 + $0x3] sm:$0x1] %v133
        %s135 = sadd.s32 %s115, 4
        %s136 = sld [smem:[#allocation3 + %s135]]
        %s137 = scalar_lea.vmem [#allocation4], %s136
        %v138 = vld [vmem:[%s137] sm:$0x1]
        %139 = vst [vmem:[%s114 + $0x4] sm:$0x1] %v138
        %s140 = sadd.s32 %s115, 5
        %s141 = sld [smem:[#allocation3 + %s140]]
        %s142 = scalar_lea.vmem [#allocation4], %s141
        %v143 = vld [vmem:[%s142] sm:$0x1]
        %144 = vst [vmem:[%s114 + $0x5] sm:$0x1] %v143
        %s145 = sadd.s32 %s115, 6
        %s146 = sld [smem:[#allocation3 + %s145]]
        %s147 = scalar_lea.vmem [#allocation4], %s146
        %v148 = vld [vmem:[%s147] sm:$0x1]
        %149 = vst [vmem:[%s114 + $0x6] sm:$0x1] %v148
        %s150 = sadd.s32 %s115, 7
        %s151 = sld [smem:[#allocation3 + %s150]]
        %s152 = scalar_lea.vmem [#allocation4], %s151
        %v153 = vld [vmem:[%s152] sm:$0x1]
        %154 = vst [vmem:[%s114 + $0x7] sm:$0x1] %v153
        %s155 = sand.u32 %s50, 1
        %s156 = scalar_lea.sflag [#allocation6], %s155
        %s157 = sand.u32 %s50, 1
        %s158 = smul.addr %s157, 8
        %s159 = scalar_lea.vmem [#allocation7], %s158
        // Predicated region
        $region29: #{tpu_custom_call.1} parent=23 // pred_check
          %p160 = pneg %p60
        $region30: #{tpu_custom_call.1} parent=23 // pred_check_branch
          %162 = sbr.rel (%p160) target = $region32
        $region31: #{tpu_custom_call.1} parent=23 // pred_region
          %s164 = ssub.s32 128, 128
          %165 = vsyncadd %s156, %s164
          %s166 = smul.addr %s21, 128
          %s167 = scalar_lea.hbm %s2, %s166
          %s169 = sshll.u32 %s159, 4
          %s170 = int_to_ptr.vmem [resolvable:$true] %s169
          %172 = dma.vmem_to_hbm [thread:$0]  %s170, 128, %s167, %s156
        $region32: #{tpu_custom_call.1} parent=23 // pred_fallthru
          _
      $region24: #{tpu_custom_call.1} parent=5 // pred_fallthru
        _
      %p173 = scmp.le.s32.totalorder 2, %s16
      // Predicated region
      $region33: #{tpu_custom_call.1} parent=5 // pred_check
        %p174 = pneg %p173
      $region34: #{tpu_custom_call.1} parent=5 // pred_check_branch
        %176 = sbr.rel (%p174) target = $region36
      $region35: #{tpu_custom_call.1} parent=5 // pred_region
        %s177 = ssub.s32 %s16, 2
        // Predicated region
        $region37: #{tpu_custom_call.1} parent=35 // pred_check
          %p178 = pneg %p66
        $region38: #{tpu_custom_call.1} parent=35 // pred_check_branch
          %180 = sbr.rel (%p178) target = $region40
        $region39: #{tpu_custom_call.1} parent=35 // pred_region
          %s181 = sand.u32 %s51, 1
          %s182 = scalar_lea.sflag [#allocation6], %s181
          %s183 = sand.u32 %s51, 1
          %s184 = smul.addr %s183, 8
          %s185 = scalar_lea.vmem [#allocation7], %s184
          %186 = dma.done %s182, 128
        $region40: #{tpu_custom_call.1} parent=35 // pred_fallthru
          _
      $region36: #{tpu_custom_call.1} parent=5 // pred_fallthru
        _
    $region6: #{tpu_custom_call.1} parent=1 // loop_footer
      %s20 = sadd.s32 1, %s16
    $region7: #{tpu_custom_call.1} parent=1 // loop_footer_branch
      %15 = sbr.rel target = $region3
    $region8: #{tpu_custom_call.1} parent=1 // loop_exit
      _
    %187 = vsyncpa [#allocation5], 1
    %s188 = scalar_lea.sflag [#allocation5], 1
    %189 = vsyncpa %s188, 1
    %190 = vsyncpa [#allocation6], 1
    %s191 = scalar_lea.sflag [#allocation6], 1
    %192 = vsyncpa %s191, 1

</llo_original>
